<compile_context>
chip_gen: v7x
topology: tpu7x:2x2x1
jax: 0.10.0
libtpu: 0.0.40
codegen_flags: <defaults>
</compile_context>

<pallas_src>
import functools

import jax
import jax.numpy as jnp
from jax.experimental import pallas as pl
from jax.experimental.pallas import tpu as pltpu


# ---------------------------------------------------------------------------
# Fused kernel: action encoder + folded attention + residual + GRU step + mlp
# ---------------------------------------------------------------------------
def predictor_kernel(state_ref, action_ref,
                     wa1r0_ref, wa1r1_ref, ba1_ref,
                     wa2_ref, ba2_ref,
                     watt_ref, batt_ref,
                     wih_ref, whh_ref, bx_ref, bhn_ref,
                     wm_ref, bm_ref,
                     out_ref, h_scr):
    """One grid step = one T-tile (GRU 'batch' rows) at one recurrence step b."""
    H2 = h_scr.shape[-1]

    # Reset the carried hidden state at the start of every B sweep.
    @pl.when(pl.program_id(1) == 0)
    def _():
        h_scr[...] = jnp.zeros_like(h_scr)

    s = state_ref[0]        # (tT, H)  f32
    a = action_ref[0]       # (tT, 2)  f32

    # ---- action encoder: Linear(2, H/2) as two VPU FMAs, then ReLU --------
    h1 = jnp.maximum(
        a[:, 0:1] * wa1r0_ref[...] + a[:, 1:2] * wa1r1_ref[...] + ba1_ref[...],
        0.0)
    # Linear(H/2, H) on the MXU (bf16 inputs, f32 accumulation)
    a_emb = jnp.dot(h1.astype(jnp.bfloat16), wa2_ref[...],
                    preferred_element_type=jnp.float32) + ba2_ref[...]

    # ---- norm2 + V-proj + out-proj folded: attended = x_hat @ W_att + b ----
    mu = jnp.mean(a_emb, axis=-1, keepdims=True)
    var = jnp.mean((a_emb - mu) ** 2, axis=-1, keepdims=True)
    x_hat = (a_emb - mu) * jax.lax.rsqrt(var + 1e-5)
    attended = jnp.dot(x_hat.astype(jnp.bfloat16), watt_ref[...],
                       preferred_element_type=jnp.float32) + batt_ref[...]

    # ---- residual: GRU input for this recurrence step ----------------------
    x = s + attended                                    # (tT, H) f32

    # ---- GRU step, gates fused into two wide matmuls (order [r|z|n]) -------
    # NOTE: h is cast to bf16 only as MXU input; the carried state stays f32.
    h = h_scr[...]                                      # (tT, 2H) f32
    gx = jnp.dot(x.astype(jnp.bfloat16), wih_ref[...],
                 preferred_element_type=jnp.float32) + bx_ref[...]   # (tT, 6H)
    gh = jnp.dot(h.astype(jnp.bfloat16), whh_ref[...],
                 preferred_element_type=jnp.float32)                 # (tT, 6H)
    r = jax.nn.sigmoid(gx[:, :H2] + gh[:, :H2])
    z = jax.nn.sigmoid(gx[:, H2:2 * H2] + gh[:, H2:2 * H2])
    n = jnp.tanh(gx[:, 2 * H2:] + r * (gh[:, 2 * H2:] + bhn_ref[...]))
    h_new = (1.0 - z) * n + z * h
    h_scr[...] = h_new

    # ---- mlp: Linear(2H, H); nn.Dropout is identity in eval mode -----------
    out_ref[0] = jnp.dot(h_new.astype(jnp.bfloat16), wm_ref[...],
                         preferred_element_type=jnp.float32) + bm_ref[...]


# ---------------------------------------------------------------------------
# Generation-aware sizing helpers
# ---------------------------------------------------------------------------
def _device_profile():
    """Return (tensorcores_per_chip, vmem_ceiling_bytes)."""
    kind = ""
    try:
        kind = jax.devices()[0].device_kind.lower()
    except Exception:  # pragma: no cover - defensive, e.g. AOT on CPU
        pass
    if "v7" in kind:
        return 2, 56 * 1024 * 1024     # 64 MiB physical VMEM per TC
    if "v6" in kind or "v5" in kind:
        return 1, 100 * 1024 * 1024    # 128 MiB physical VMEM
    return 1, 64 * 1024 * 1024         # conservative default


def _vmem_bytes(tT, H):
    """Approximate resident VMEM for one grid step (bytes)."""
    H2, H6 = 2 * H, 6 * H
    weights = 43 * H * H + 64 * H                     # single-buffered consts
    streamed = 2 * 2 * (4 * tT * H) + 2 * (8 * tT)    # state+out (x2 buf), action
    scratch = 4 * tT * H2                             # h_scr f32
    temps = 2 * (4 * tT * H6) + 6 * (4 * tT * H)      # gx/gh f32 + misc
    return weights + streamed + scratch + temps


def _pick_t_tile(T, H, num_tc, vmem_ceiling, max_rows=1024):
    """Choose the T-tile: multiple of 16 (then 8) dividing T, VMEM-fitting.

    v7x (2 TCs): prefer nT >= 2 so both TensorCores get independent shards.
    v5e/v6e (1 TC): prefer the largest fitting tile (nT = 1 if possible).
    """
    divisors = [d for d in range(1, T + 1) if T % d == 0]
    cands = [d for d in divisors if d % 16 == 0 and d <= max_rows]
    if not cands:
        cands = [d for d in divisors if d % 8 == 0 and d <= max_rows]
    if not cands:
        cands = [T]                    # full-dim block is always layout-legal
    cands = sorted(set(cands), reverse=True)

    def fits(tt):
        return _vmem_bytes(tt, H) <= vmem_ceiling

    if num_tc >= 2:
        split = [d for d in cands if T // d >= 2 and fits(d)]
        if split:
            return split[0]
    for d in cands:
        if fits(d):
            return d
    return cands[-1]


# ---------------------------------------------------------------------------
# Wrapper: offline algebraic folding + one pallas_call
# ---------------------------------------------------------------------------
def predictor_forward(state, action, params):
    B, T, H = state.shape
    Hh, H2, H6 = H // 2, 2 * H, 6 * H
    f32, bf16 = jnp.float32, jnp.bfloat16

    # ---------------- trace-time (free) parameter folding --------------------
    wa1 = params["wa1"].astype(f32)                         # (H/2, 2)
    wa1_r0 = wa1[:, 0].reshape(1, Hh)
    wa1_r1 = wa1[:, 1].reshape(1, Hh)
    ba1 = params["ba1"].reshape(1, Hh).astype(f32)
    wa2_t = params["wa2"].T.astype(bf16)                    # (H/2, H)
    ba2 = params["ba2"].reshape(1, H).astype(f32)

    # Fold LayerNorm affine + V-projection + out-projection into one matmul.
    g2, b2 = params["g2"], params["b2"]
    wv_t = params["in_proj_w"][2 * H:3 * H].T               # (H, H) V slice
    bv = params["in_proj_b"][2 * H:3 * H]
    wo_t = params["wo"].T
    w_att = ((g2[:, None] * wv_t) @ wo_t).astype(bf16)                    # (H, H)
    b_att = ((b2 @ wv_t + bv) @ wo_t + params["bo"]).reshape(1, H).astype(f32)

    # Concatenated GRU weights / biases (gate order [r|z|n]).
    w_ih, w_hh = params["w_ih"], params["w_hh"]
    b_ih, b_hh = params["b_ih"], params["b_hh"]
    w_ih_cat = w_ih.T.astype(bf16)                          # (H,  6H)
    w_hh_cat = w_hh.T.astype(bf16)                          # (2H, 6H)
    bx_cat = jnp.concatenate([b_ih[:H2] + b_hh[:H2],
                              b_ih[H2:2 * H2] + b_hh[H2:2 * H2],
                              b_ih[2 * H2:]]).reshape(1, H6).astype(f32)
    bhn = b_hh[2 * H2:].reshape(1, H2).astype(f32)

    wm_t = params["wm"].T.astype(bf16)                      # (2H, H)
    bm = params["bm"].reshape(1, H).astype(f32)

    # ---------------- generation-aware sizing --------------------------------
    num_tc, vmem_ceiling = _device_profile()
    tT = _pick_t_tile(T, H, num_tc, vmem_ceiling)
    nT = T // tT
    vmem_limit = int(min(vmem_ceiling,
                         max(32 * 1024 * 1024, 1.25 * _vmem_bytes(tT, H))))

    # Advisory cost estimate (MACs*2 for the 5 matmuls: 0.5+1+6+12+2 = 21.5 H^2).
    cost = pl.CostEstimate(
        flops=int(2 * B * T * 21.5 * H * H),
        transcendentals=int(6 * B * T * H),
        bytes_accessed=int(8 * B * T * H + 8 * B * T + 43 * H * H),
    )

    # Constants: index map never changes -> single-buffer (halves weight VMEM).
    const = lambda shape: pl.BlockSpec(shape, lambda i, b: (0, 0),
                                       pipeline_mode=pl.Buffered(1))

    # ---------------- fused pallas_call --------------------------------------
    states = pl.pallas_call(
        predictor_kernel,
        out_shape=jax.ShapeDtypeStruct((B, T, H), jnp.float32),
        grid=(nT, B),
        in_specs=[
            pl.BlockSpec((1, tT, H), lambda i, b: (b, i, 0)),   # state
            pl.BlockSpec((1, tT, 2), lambda i, b: (b, i, 0)),   # action
            const((1, Hh)), const((1, Hh)), const((1, Hh)),     # wa1 rows, ba1
            const((Hh, H)), const((1, H)),                      # wa2, ba2
            const((H, H)), const((1, H)),                       # W_att, b_att
            const((H, H6)), const((H2, H6)),                    # W_ih, W_hh
            const((1, H6)), const((1, H2)),                     # bx_cat, bhn
            const((H2, H)), const((1, H)),                      # wm, bm
        ],
        out_specs=pl.BlockSpec((1, tT, H), lambda i, b: (b, i, 0)),
        scratch_shapes=[pltpu.VMEM((tT, H2), jnp.float32)],
        cost_estimate=cost,
        compiler_params=pltpu.CompilerParams(
            # T-tiles are independent -> shard across TensorCores (v7x);
            # B is the carried recurrence -> keep it last and sequential.
            dimension_semantics=("parallel", "arbitrary"),
            vmem_limit_bytes=vmem_limit),
    )(state, action,
      wa1_r0, wa1_r1, ba1, wa2_t, ba2, w_att, b_att,
      w_ih_cat, w_hh_cat, bx_cat, bhn, wm_t, bm)

    return states, states[:, -1]


# ---------------------------------------------------------------------------
# Pure-JAX mirror of the PyTorch module (used only for in-script self-check)
# ---------------------------------------------------------------------------
def _layernorm(x, g, b, eps=1e-5):
    mu = jnp.mean(x, axis=-1, keepdims=True)
    var = jnp.mean((x - mu) ** 2, axis=-1, keepdims=True)
    return (x - mu) * jax.lax.rsqrt(var + eps) * g + b


def reference_forward(state, action, params):
    B, T, H = state.shape
    H2 = 2 * H
    a = action.reshape(B * T, 2)
    h1 = jnp.maximum(a @ params["wa1"].T + params["ba1"], 0.0)
    a_emb = h1 @ params["wa2"].T + params["ba2"]
    kv = _layernorm(a_emb, params["g2"], params["b2"])
    wv_t = params["in_proj_w"][2 * H:3 * H].T
    bv = params["in_proj_b"][2 * H:3 * H]
    attended = (kv @ wv_t + bv) @ params["wo"].T + params["bo"]
    x = (state.reshape(B * T, H) + attended).reshape(B, T, H)

    w_ih_t, w_hh_t = params["w_ih"].T, params["w_hh"].T
    b_ih, b_hh = params["b_ih"], params["b_hh"]

    def step(h, xt):
        gi = xt @ w_ih_t + b_ih
        gh = h @ w_hh_t + b_hh
        r = jax.nn.sigmoid(gi[:, :H2] + gh[:, :H2])
        z = jax.nn.sigmoid(gi[:, H2:2 * H2] + gh[:, H2:2 * H2])
        n = jnp.tanh(gi[:, 2 * H2:] + r * gh[:, 2 * H2:])
        h_new = (1.0 - z) * n + z * h
        return h_new, h_new

    _, out = jax.lax.scan(step, jnp.zeros((T, H2), jnp.float32), x)
    states = out @ params["wm"].T + params["bm"]
    return states, states[:, -1]


# ---------------------------------------------------------------------------
# Deterministic synthetic parameters (same shapes as the PyTorch module)
# ---------------------------------------------------------------------------
def init_params(key, H):
    H2 = 2 * H
    ks = jax.random.split(key, 14)

    def w(k, shape, scale=0.1):
        return scale * jax.random.normal(k, shape, dtype=jnp.float32)

    return dict(
        wa1=w(ks[0], (H // 2, 2)),          # action_encoder[0].weight
        ba1=w(ks[1], (H // 2,)),
        wa2=w(ks[2], (H, H // 2)),          # action_encoder[2].weight
        ba2=w(ks[3], (H,)),
        in_proj_w=w(ks[4], (3 * H, H)),     # cross_attention.in_proj_weight
        in_proj_b=w(ks[5], (3 * H,)),
        wo=w(ks[6], (H, H)),                # cross_attention.out_proj
        bo=w(ks[7], (H,)),
        g1=jnp.ones((H,), jnp.float32),     # norm1 (unused: single-key softmax == 1)
        b1=jnp.zeros((H,), jnp.float32),
        g2=jnp.ones((H,), jnp.float32),     # norm2
        b2=jnp.zeros((H,), jnp.float32),
        w_ih=w(ks[8], (3 * H2, H)),         # GRU.weight_ih_l0
        w_hh=w(ks[9], (3 * H2, H2)),        # GRU.weight_hh_l0
        b_ih=w(ks[10], (3 * H2,)),
        b_hh=w(ks[11], (3 * H2,)),
        wm=w(ks[12], (H, H2)),              # mlp
        bm=w(ks[13], (H,)),
    )


if __name__ == "__main__":
    B, T, H = 2, 8, 32
    key = jax.random.PRNGKey(0)
    k_state, k_action, k_param = jax.random.split(key, 3)
    state = jax.random.normal(k_state, (B, T, H), dtype=jnp.float32)
    action = jax.random.normal(k_action, (B, T, 2), dtype=jnp.float32)
    params = init_params(k_param, H)

    fwd = jax.jit(functools.partial(predictor_forward, params=params))
    states, last = fwd(state, action)
    jax.block_until_ready((states, last))

    assert states.shape == (B, T, H), states.shape
    assert last.shape == (B, H), last.shape
    assert jnp.all(jnp.isfinite(states)) and jnp.all(jnp.isfinite(last))

    # Self-check vs. a pure-JAX mirror of the PyTorch math
    # (bf16 MXU inputs -> loose tolerance).
    ref_states, ref_last = reference_forward(state, action, params)
    max_err = float(jnp.max(jnp.abs(states - ref_states)))
    assert max_err < 5e-2, f"max abs err vs reference: {max_err}"

    print("KERNEL_OK")
</pallas_src>

<mosaic_0001>
module attributes {stable_mosaic.version = 11 : i64} {
  func.func @predictor_kernel(%arg0: i32, %arg1: i32, %arg2: memref<1x8x32xf32, #tpu.memory_space<vmem>>, %arg3: memref<1x8x2xf32, #tpu.memory_space<vmem>>, %arg4: memref<1x16xf32, #tpu.memory_space<vmem>>, %arg5: memref<1x16xf32, #tpu.memory_space<vmem>>, %arg6: memref<1x16xf32, #tpu.memory_space<vmem>>, %arg7: memref<16x32xbf16, #tpu.memory_space<vmem>>, %arg8: memref<1x32xf32, #tpu.memory_space<vmem>>, %arg9: memref<32x32xbf16, #tpu.memory_space<vmem>>, %arg10: memref<1x32xf32, #tpu.memory_space<vmem>>, %arg11: memref<32x192xbf16, #tpu.memory_space<vmem>>, %arg12: memref<64x192xbf16, #tpu.memory_space<vmem>>, %arg13: memref<1x192xf32, #tpu.memory_space<vmem>>, %arg14: memref<1x64xf32, #tpu.memory_space<vmem>>, %arg15: memref<64x32xbf16, #tpu.memory_space<vmem>>, %arg16: memref<1x32xf32, #tpu.memory_space<vmem>>, %arg17: memref<1x8x32xf32, #tpu.memory_space<vmem>>, %arg18: memref<8x64xf32, #tpu.memory_space<vmem>>) attributes {dimension_semantics = [#tpu.dimension_semantics<parallel>, #tpu.dimension_semantics<arbitrary>], iteration_bounds = array<i64: 1, 2>, scalar_prefetch = 0 : i64, scratch_operands = 1 : i64, tpu.core_type = #tpu.core_type<tc>, window_params = [{transform_indices = @transform_0, window_bounds = array<i64: 1, 8, 32>}, {transform_indices = @transform_1, window_bounds = array<i64: 1, 8, 2>}, {pipeline_mode = #tpu.pipeline_mode<synchronous>, transform_indices = @transform_2, window_bounds = array<i64: 1, 16>}, {pipeline_mode = #tpu.pipeline_mode<synchronous>, transform_indices = @transform_3, window_bounds = array<i64: 1, 16>}, {pipeline_mode = #tpu.pipeline_mode<synchronous>, transform_indices = @transform_4, window_bounds = array<i64: 1, 16>}, {pipeline_mode = #tpu.pipeline_mode<synchronous>, transform_indices = @transform_5, window_bounds = array<i64: 16, 32>}, {pipeline_mode = #tpu.pipeline_mode<synchronous>, transform_indices = @transform_6, window_bounds = array<i64: 1, 32>}, {pipeline_mode = #tpu.pipeline_mode<synchronous>, transform_indices = @transform_7, window_bounds = array<i64: 32, 32>}, {pipeline_mode = #tpu.pipeline_mode<synchronous>, transform_indices = @transform_8, window_bounds = array<i64: 1, 32>}, {pipeline_mode = #tpu.pipeline_mode<synchronous>, transform_indices = @transform_9, window_bounds = array<i64: 32, 192>}, {pipeline_mode = #tpu.pipeline_mode<synchronous>, transform_indices = @transform_10, window_bounds = array<i64: 64, 192>}, {pipeline_mode = #tpu.pipeline_mode<synchronous>, transform_indices = @transform_11, window_bounds = array<i64: 1, 192>}, {pipeline_mode = #tpu.pipeline_mode<synchronous>, transform_indices = @transform_12, window_bounds = array<i64: 1, 64>}, {pipeline_mode = #tpu.pipeline_mode<synchronous>, transform_indices = @transform_13, window_bounds = array<i64: 64, 32>}, {pipeline_mode = #tpu.pipeline_mode<synchronous>, transform_indices = @transform_14, window_bounds = array<i64: 1, 32>}, {transform_indices = @transform_15, window_bounds = array<i64: 1, 8, 32>}]} {
    %c0_i32 = arith.constant 0 : i32
    %0 = arith.cmpi eq, %arg1, %c0_i32 : i32
    %1 = arith.extui %0 : i1 to i32
    %c0_i32_0 = arith.constant 0 : i32
    %2 = arith.cmpi ne, %1, %c0_i32_0 : i32
    scf.if %2 {
      %cst_52 = arith.constant 0.000000e+00 : f32
      %103 = vector.broadcast %cst_52 : f32 to vector<8x64xf32>
      %c0_53 = arith.constant 0 : index
      %c0_54 = arith.constant 0 : index
      %104 = vector.load %arg18[%c0_53, %c0_54] : memref<8x64xf32, #tpu.memory_space<vmem>>, vector<8x64xf32>
      tpu.vector_store %arg18[%c0_53, %c0_54], %103 {strides = array<i32>} : memref<8x64xf32, #tpu.memory_space<vmem>>, vector<8x64xf32>,
    } else {
    }
    %c0 = arith.constant 0 : index
    %c0_1 = arith.constant 0 : index
    %c0_2 = arith.constant 0 : index
    %3 = vector.load %arg2[%c0, %c0_1, %c0_2] : memref<1x8x32xf32, #tpu.memory_space<vmem>>, vector<1x8x32xf32>
    %4 = vector.shape_cast %3 : vector<1x8x32xf32> to vector<8x32xf32>
    %c0_3 = arith.constant 0 : index
    %c0_4 = arith.constant 0 : index
    %c0_5 = arith.constant 0 : index
    %5 = vector.load %arg3[%c0_3, %c0_4, %c0_5] : memref<1x8x2xf32, #tpu.memory_space<vmem>>, vector<1x8x2xf32>
    %6 = vector.shape_cast %5 : vector<1x8x2xf32> to vector<8x2xf32>
    %7 = vector.extract_strided_slice %6 {offsets = [0, 0], sizes = [8, 1], strides = [1, 1]} : vector<8x2xf32> to vector<8x1xf32>
    %c0_6 = arith.constant 0 : index
    %c0_7 = arith.constant 0 : index
    %8 = vector.load %arg4[%c0_6, %c0_7] : memref<1x16xf32, #tpu.memory_space<vmem>>, vector<1x16xf32>
    %9 = vector.broadcast %7 : vector<8x1xf32> to vector<8x16xf32>
    %10 = vector.broadcast %8 : vector<1x16xf32> to vector<8x16xf32>
    %11 = arith.mulf %9, %10 : vector<8x16xf32>
    %12 = vector.extract_strided_slice %6 {offsets = [0, 1], sizes = [8, 1], strides = [1, 1]} : vector<8x2xf32> to vector<8x1xf32>
    %c0_8 = arith.constant 0 : index
    %c0_9 = arith.constant 0 : index
    %13 = vector.load %arg5[%c0_8, %c0_9] : memref<1x16xf32, #tpu.memory_space<vmem>>, vector<1x16xf32>
    %14 = vector.broadcast %12 : vector<8x1xf32> to vector<8x16xf32>
    %15 = vector.broadcast %13 : vector<1x16xf32> to vector<8x16xf32>
    %16 = arith.mulf %14, %15 : vector<8x16xf32>
    %17 = arith.addf %11, %16 : vector<8x16xf32>
    %c0_10 = arith.constant 0 : index
    %c0_11 = arith.constant 0 : index
    %18 = vector.load %arg6[%c0_10, %c0_11] : memref<1x16xf32, #tpu.memory_space<vmem>>, vector<1x16xf32>
    %19 = vector.broadcast %18 : vector<1x16xf32> to vector<8x16xf32>
    %20 = arith.addf %17, %19 : vector<8x16xf32>
    %cst = arith.constant 0.000000e+00 : f32
    %21 = vector.broadcast %cst : f32 to vector<8x16xf32>
    %22 = arith.maximumf %20, %21 : vector<8x16xf32>
    %23 = arith.truncf %22 : vector<8x16xf32> to vector<8x16xbf16>
    %c0_12 = arith.constant 0 : index
    %c0_13 = arith.constant 0 : index
    %24 = vector.load %arg7[%c0_12, %c0_13] : memref<16x32xbf16, #tpu.memory_space<vmem>>, vector<16x32xbf16>
    %cst_14 = arith.constant dense<0.000000e+00> : vector<8x32xf32>
    %25 = tpu.matmul %23, %24, %cst_14 {dimension_numbers = #tpu.dot_dimension_numbers<[1], [0], [0], [1], [0, 0, 1, 1], [], []>} : vector<8x16xbf16>, vector<16x32xbf16>, vector<8x32xf32> -> vector<8x32xf32>
    %c0_15 = arith.constant 0 : index
    %c0_16 = arith.constant 0 : index
    %26 = vector.load %arg8[%c0_15, %c0_16] : memref<1x32xf32, #tpu.memory_space<vmem>>, vector<1x32xf32>
    %27 = vector.broadcast %26 : vector<1x32xf32> to vector<8x32xf32>
    %28 = arith.addf %25, %27 : vector<8x32xf32>
    %cst_17 = arith.constant dense<0.000000e+00> : vector<8xf32>
    %29 = vector.multi_reduction <add>, %28, %cst_17 [1] : vector<8x32xf32> to vector<8xf32>
    %30 = vector.shape_cast %29 : vector<8xf32> to vector<8x1xf32>
    %cst_18 = arith.constant 3.200000e+01 : f32
    %31 = vector.broadcast %cst_18 : f32 to vector<8x1xf32>
    %32 = arith.divf %30, %31 : vector<8x1xf32>
    %33 = vector.broadcast %32 : vector<8x1xf32> to vector<8x32xf32>
    %34 = arith.subf %28, %33 : vector<8x32xf32>
    %35 = arith.mulf %34, %34 : vector<8x32xf32>
    %cst_19 = arith.constant dense<0.000000e+00> : vector<8xf32>
    %36 = vector.multi_reduction <add>, %35, %cst_19 [1] : vector<8x32xf32> to vector<8xf32>
    %37 = vector.shape_cast %36 : vector<8xf32> to vector<8x1xf32>
    %cst_20 = arith.constant 3.200000e+01 : f32
    %38 = vector.broadcast %cst_20 : f32 to vector<8x1xf32>
    %39 = arith.divf %37, %38 : vector<8x1xf32>
    %40 = vector.broadcast %32 : vector<8x1xf32> to vector<8x32xf32>
    %41 = arith.subf %28, %40 : vector<8x32xf32>
    %cst_21 = arith.constant 9.99999974E-6 : f32
    %42 = vector.broadcast %cst_21 : f32 to vector<8x1xf32>
    %43 = arith.addf %39, %42 : vector<8x1xf32>
    %44 = math.rsqrt %43 : vector<8x1xf32>
    %45 = vector.broadcast %44 : vector<8x1xf32> to vector<8x32xf32>
    %46 = arith.mulf %41, %45 : vector<8x32xf32>
    %47 = arith.truncf %46 : vector<8x32xf32> to vector<8x32xbf16>
    %c0_22 = arith.constant 0 : index
    %c0_23 = arith.constant 0 : index
    %48 = vector.load %arg9[%c0_22, %c0_23] : memref<32x32xbf16, #tpu.memory_space<vmem>>, vector<32x32xbf16>
    %cst_24 = arith.constant dense<0.000000e+00> : vector<8x32xf32>
    %49 = tpu.matmul %47, %48, %cst_24 {dimension_numbers = #tpu.dot_dimension_numbers<[1], [0], [0], [1], [0, 0, 1, 1], [], []>} : vector<8x32xbf16>, vector<32x32xbf16>, vector<8x32xf32> -> vector<8x32xf32>
    %c0_25 = arith.constant 0 : index
    %c0_26 = arith.constant 0 : index
    %50 = vector.load %arg10[%c0_25, %c0_26] : memref<1x32xf32, #tpu.memory_space<vmem>>, vector<1x32xf32>
    %51 = vector.broadcast %50 : vector<1x32xf32> to vector<8x32xf32>
    %52 = arith.addf %49, %51 : vector<8x32xf32>
    %53 = arith.addf %4, %52 : vector<8x32xf32>
    %c0_27 = arith.constant 0 : index
    %c0_28 = arith.constant 0 : index
    %54 = vector.load %arg18[%c0_27, %c0_28] : memref<8x64xf32, #tpu.memory_space<vmem>>, vector<8x64xf32>
    %55 = arith.truncf %53 : vector<8x32xf32> to vector<8x32xbf16>
    %c0_29 = arith.constant 0 : index
    %c0_30 = arith.constant 0 : index
    %56 = vector.load %arg11[%c0_29, %c0_30] : memref<32x192xbf16, #tpu.memory_space<vmem>>, vector<32x192xbf16>
    %cst_31 = arith.constant dense<0.000000e+00> : vector<8x192xf32>
    %57 = tpu.matmul %55, %56, %cst_31 {dimension_numbers = #tpu.dot_dimension_numbers<[1], [0], [0], [1], [0, 0, 1, 1], [], []>} : vector<8x32xbf16>, vector<32x192xbf16>, vector<8x192xf32> -> vector<8x192xf32>
    %c0_32 = arith.constant 0 : index
    %c0_33 = arith.constant 0 : index
    %58 = vector.load %arg13[%c0_32, %c0_33] : memref<1x192xf32, #tpu.memory_space<vmem>>, vector<1x192xf32>
    %59 = vector.broadcast %58 : vector<1x192xf32> to vector<8x192xf32>
    %60 = arith.addf %57, %59 : vector<8x192xf32>
    %61 = arith.truncf %54 : vector<8x64xf32> to vector<8x64xbf16>
    %c0_34 = arith.constant 0 : index
    %c0_35 = arith.constant 0 : index
    %62 = vector.load %arg12[%c0_34, %c0_35] : memref<64x192xbf16, #tpu.memory_space<vmem>>, vector<64x192xbf16>
    %cst_36 = arith.constant dense<0.000000e+00> : vector<8x192xf32>
    %63 = tpu.matmul %61, %62, %cst_36 {dimension_numbers = #tpu.dot_dimension_numbers<[1], [0], [0], [1], [0, 0, 1, 1], [], []>} : vector<8x64xbf16>, vector<64x192xbf16>, vector<8x192xf32> -> vector<8x192xf32>
    %64 = vector.extract_strided_slice %60 {offsets = [0, 0], sizes = [8, 64], strides = [1, 1]} : vector<8x192xf32> to vector<8x64xf32>
    %65 = vector.extract_strided_slice %63 {offsets = [0, 0], sizes = [8, 64], strides = [1, 1]} : vector<8x192xf32> to vector<8x64xf32>
    %66 = arith.addf %64, %65 : vector<8x64xf32>
    %67 = arith.negf %66 : vector<8x64xf32>
    %68 = math.exp %67 : vector<8x64xf32>
    %cst_37 = arith.constant 1.000000e+00 : f32
    %69 = vector.broadcast %cst_37 : f32 to vector<8x64xf32>
    %70 = arith.addf %69, %68 : vector<8x64xf32>
    %71 = arith.divf %69, %70 : vector<8x64xf32>
    %72 = vector.extract_strided_slice %60 {offsets = [0, 64], sizes = [8, 64], strides = [1, 1]} : vector<8x192xf32> to vector<8x64xf32>
    %73 = vector.extract_strided_slice %63 {offsets = [0, 64], sizes = [8, 64], strides = [1, 1]} : vector<8x192xf32> to vector<8x64xf32>
    %74 = arith.addf %72, %73 : vector<8x64xf32>
    %75 = arith.negf %74 : vector<8x64xf32>
    %76 = math.exp %75 : vector<8x64xf32>
    %cst_38 = arith.constant 1.000000e+00 : f32
    %77 = vector.broadcast %cst_38 : f32 to vector<8x64xf32>
    %78 = arith.addf %77, %76 : vector<8x64xf32>
    %79 = arith.divf %77, %78 : vector<8x64xf32>
    %80 = vector.extract_strided_slice %60 {offsets = [0, 128], sizes = [8, 64], strides = [1, 1]} : vector<8x192xf32> to vector<8x64xf32>
    %81 = vector.extract_strided_slice %63 {offsets = [0, 128], sizes = [8, 64], strides = [1, 1]} : vector<8x192xf32> to vector<8x64xf32>
    %c0_39 = arith.constant 0 : index
    %c0_40 = arith.constant 0 : index
    %82 = vector.load %arg14[%c0_39, %c0_40] : memref<1x64xf32, #tpu.memory_space<vmem>>, vector<1x64xf32>
    %83 = vector.broadcast %82 : vector<1x64xf32> to vector<8x64xf32>
    %84 = arith.addf %81, %83 : vector<8x64xf32>
    %85 = arith.mulf %71, %84 : vector<8x64xf32>
    %86 = arith.addf %80, %85 : vector<8x64xf32>
    %87 = math.tanh %86 : vector<8x64xf32>
    %cst_41 = arith.constant 1.000000e+00 : f32
    %88 = vector.broadcast %cst_41 : f32 to vector<8x64xf32>
    %89 = arith.subf %88, %79 : vector<8x64xf32>
    %90 = arith.mulf %89, %87 : vector<8x64xf32>
    %91 = arith.mulf %79, %54 : vector<8x64xf32>
    %92 = arith.addf %90, %91 : vector<8x64xf32>
    %c0_42 = arith.constant 0 : index
    %c0_43 = arith.constant 0 : index
    %93 = vector.load %arg18[%c0_42, %c0_43] : memref<8x64xf32, #tpu.memory_space<vmem>>, vector<8x64xf32>
    tpu.vector_store %arg18[%c0_42, %c0_43], %92 {strides = array<i32>} : memref<8x64xf32, #tpu.memory_space<vmem>>, vector<8x64xf32>,
    %94 = arith.truncf %92 : vector<8x64xf32> to vector<8x64xbf16>
    %c0_44 = arith.constant 0 : index
    %c0_45 = arith.constant 0 : index
    %95 = vector.load %arg15[%c0_44, %c0_45] : memref<64x32xbf16, #tpu.memory_space<vmem>>, vector<64x32xbf16>
    %cst_46 = arith.constant dense<0.000000e+00> : vector<8x32xf32>
    %96 = tpu.matmul %94, %95, %cst_46 {dimension_numbers = #tpu.dot_dimension_numbers<[1], [0], [0], [1], [0, 0, 1, 1], [], []>} : vector<8x64xbf16>, vector<64x32xbf16>, vector<8x32xf32> -> vector<8x32xf32>
    %c0_47 = arith.constant 0 : index
    %c0_48 = arith.constant 0 : index
    %97 = vector.load %arg16[%c0_47, %c0_48] : memref<1x32xf32, #tpu.memory_space<vmem>>, vector<1x32xf32>
    %98 = vector.broadcast %97 : vector<1x32xf32> to vector<8x32xf32>
    %99 = arith.addf %96, %98 : vector<8x32xf32>
    %c0_49 = arith.constant 0 : index
    %c0_50 = arith.constant 0 : index
    %c0_51 = arith.constant 0 : index
    %100 = vector.load %arg17[%c0_49, %c0_50, %c0_51] : memref<1x8x32xf32, #tpu.memory_space<vmem>>, vector<1x8x32xf32>
    %101 = vector.shape_cast %100 : vector<1x8x32xf32> to vector<8x32xf32>
    %102 = vector.shape_cast %99 : vector<8x32xf32> to vector<1x8x32xf32>
    tpu.vector_store %arg17[%c0_49, %c0_50, %c0_51], %102 {strides = array<i32>} : memref<1x8x32xf32, #tpu.memory_space<vmem>>, vector<1x8x32xf32>,
    return
  }
  func.func @transform_0(%arg0: i32, %arg1: i32) -> (i32, i32, i32) {
    %c0_i32 = arith.constant 0 : i32
    %c0_i32_0 = arith.constant 0 : i32
    return %arg1, %arg0, %c0_i32 : i32, i32, i32
  }
  func.func @transform_1(%arg0: i32, %arg1: i32) -> (i32, i32, i32) {
    %c0_i32 = arith.constant 0 : i32
    %c0_i32_0 = arith.constant 0 : i32
    return %arg1, %arg0, %c0_i32 : i32, i32, i32
  }
  func.func @transform_2(%arg0: i32, %arg1: i32) -> (i32, i32) {
    %c0_i32 = arith.constant 0 : i32
    %c0_i32_0 = arith.constant 0 : i32
    %c0_i32_1 = arith.constant 0 : i32
    return %c0_i32, %c0_i32_0 : i32, i32
  }
  func.func @transform_3(%arg0: i32, %arg1: i32) -> (i32, i32) {
    %c0_i32 = arith.constant 0 : i32
    %c0_i32_0 = arith.constant 0 : i32
    %c0_i32_1 = arith.constant 0 : i32
    return %c0_i32, %c0_i32_0 : i32, i32
  }
  func.func @transform_4(%arg0: i32, %arg1: i32) -> (i32, i32) {
    %c0_i32 = arith.constant 0 : i32
    %c0_i32_0 = arith.constant 0 : i32
    %c0_i32_1 = arith.constant 0 : i32
    return %c0_i32, %c0_i32_0 : i32, i32
  }
  func.func @transform_5(%arg0: i32, %arg1: i32) -> (i32, i32) {
    %c0_i32 = arith.constant 0 : i32
    %c0_i32_0 = arith.constant 0 : i32
    %c0_i32_1 = arith.constant 0 : i32
    return %c0_i32, %c0_i32_0 : i32, i32
  }
  func.func @transform_6(%arg0: i32, %arg1: i32) -> (i32, i32) {
    %c0_i32 = arith.constant 0 : i32
    %c0_i32_0 = arith.constant 0 : i32
    %c0_i32_1 = arith.constant 0 : i32
    return %c0_i32, %c0_i32_0 : i32, i32
  }
  func.func @transform_7(%arg0: i32, %arg1: i32) -> (i32, i32) {
    %c0_i32 = arith.constant 0 : i32
    %c0_i32_0 = arith.constant 0 : i32
    %c0_i32_1 = arith.constant 0 : i32
    return %c0_i32, %c0_i32_0 : i32, i32
  }
  func.func @transform_8(%arg0: i32, %arg1: i32) -> (i32, i32) {
    %c0_i32 = arith.constant 0 : i32
    %c0_i32_0 = arith.constant 0 : i32
    %c0_i32_1 = arith.constant 0 : i32
    return %c0_i32, %c0_i32_0 : i32, i32
  }
  func.func @transform_9(%arg0: i32, %arg1: i32) -> (i32, i32) {
    %c0_i32 = arith.constant 0 : i32
    %c0_i32_0 = arith.constant 0 : i32
    %c0_i32_1 = arith.constant 0 : i32
    return %c0_i32, %c0_i32_0 : i32, i32
  }
  func.func @transform_10(%arg0: i32, %arg1: i32) -> (i32, i32) {
    %c0_i32 = arith.constant 0 : i32
    %c0_i32_0 = arith.constant 0 : i32
    %c0_i32_1 = arith.constant 0 : i32
    return %c0_i32, %c0_i32_0 : i32, i32
  }
  func.func @transform_11(%arg0: i32, %arg1: i32) -> (i32, i32) {
    %c0_i32 = arith.constant 0 : i32
    %c0_i32_0 = arith.constant 0 : i32
    %c0_i32_1 = arith.constant 0 : i32
    return %c0_i32, %c0_i32_0 : i32, i32
  }
  func.func @transform_12(%arg0: i32, %arg1: i32) -> (i32, i32) {
    %c0_i32 = arith.constant 0 : i32
    %c0_i32_0 = arith.constant 0 : i32
    %c0_i32_1 = arith.constant 0 : i32
    return %c0_i32, %c0_i32_0 : i32, i32
  }
  func.func @transform_13(%arg0: i32, %arg1: i32) -> (i32, i32) {
    %c0_i32 = arith.constant 0 : i32
    %c0_i32_0 = arith.constant 0 : i32
    %c0_i32_1 = arith.constant 0 : i32
    return %c0_i32, %c0_i32_0 : i32, i32
  }
  func.func @transform_14(%arg0: i32, %arg1: i32) -> (i32, i32) {
    %c0_i32 = arith.constant 0 : i32
    %c0_i32_0 = arith.constant 0 : i32
    %c0_i32_1 = arith.constant 0 : i32
    return %c0_i32, %c0_i32_0 : i32, i32
  }
  func.func @transform_15(%arg0: i32, %arg1: i32) -> (i32, i32, i32) {
    %c0_i32 = arith.constant 0 : i32
    %c0_i32_0 = arith.constant 0 : i32
    return %arg1, %arg0, %c0_i32 : i32, i32, i32
  }
}

</mosaic_0001>

<llo_original>
// kernel: predictor_forward.1
$region0: #{predictor_forward.1}
  #allocation0 [shape = 'u32[]', space=smem, size = 0x4, offset = 0x4, fixed_abs, tag = 'smem constant byte address 0x4 - core index']
  #allocation1 [shape = 'u32[144,128]{1,0:T(1,128)}', space=vmem, size = 0x12000, scoped, tag = 'internal scratch']
  #allocation2 [shape = 'f32[8,64]{1,0:T(8,128)}', space=vmem, size = 0x1000, scoped, tag = 'scratch operand']
  %s0 = inlined_call_operand.vmem [shape: f32[2,8,32], index: 0, kind: input, shape index: {}]
  %s1 = inlined_call_operand.vmem [shape: f32[2,8,2], index: 1, kind: input, shape index: {}]
  %s2 = inlined_call_operand.vmem [shape: f32[1,16], index: 2, kind: input, shape index: {}]
  %s3 = inlined_call_operand.vmem [shape: f32[1,16], index: 3, kind: input, shape index: {}]
  %s4 = inlined_call_operand.vmem [shape: f32[1,16], index: 4, kind: input, shape index: {}]
  %s5 = inlined_call_operand.vmem [shape: bf16[16,32], index: 5, kind: input, shape index: {}]
  %s6 = inlined_call_operand.vmem [shape: f32[1,32], index: 6, kind: input, shape index: {}]
  %s7 = inlined_call_operand.vmem [shape: bf16[32,32], index: 7, kind: input, shape index: {}]
  %s8 = inlined_call_operand.vmem [shape: f32[1,32], index: 8, kind: input, shape index: {}]
  %s9 = inlined_call_operand.vmem [shape: bf16[32,192], index: 9, kind: input, shape index: {}]
  %s10 = inlined_call_operand.vmem [shape: bf16[64,192], index: 10, kind: input, shape index: {}]
  %s11 = inlined_call_operand.vmem [shape: f32[1,192], index: 11, kind: input, shape index: {}]
  %s12 = inlined_call_operand.vmem [shape: f32[1,64], index: 12, kind: input, shape index: {}]
  %s13 = inlined_call_operand.vmem [shape: bf16[64,32], index: 13, kind: input, shape index: {}]
  %s14 = inlined_call_operand.vmem [shape: f32[1,32], index: 14, kind: input, shape index: {}]
  %s15 = inlined_call_operand.vmem [shape: f32[2,8,32], index: 15, kind: output, shape index: {}]
  %s16 = sld [smem:[#allocation0]]
  $region97: #{predictor_forward.1} parent=0
    _
  %s18 = ssub.s32 1, %s16
  %s19 = scalar_select 0, %s18, %s16
  loop: start=0, step=1, limit=4
  $region2: #{predictor_forward.1} parent=0 // loop_pre_header
    _
  $region3: #{predictor_forward.1} parent=0 // loop_header
    %s21 = sphi 0, %s25
    %p22 = scmp.ge.s32.totalorder %s21, 4
    %s28 = sphi 0, %s40
    %s29 = sphi 0, %s36
    %s30 = sphi 0, %s28
    %s31 = sphi 0, %s29
    %s32 = sphi 0, %s30
    %s33 = sphi 0, %s31
    %s45 = sphi 0, %s47
    %s48 = sphi 0, %s45
    %s49 = sphi 0, %s48
    %s65 = sphi 0, %s49
    %s73 = sphi 0, %s75
    %s76 = sphi 0, %s73
    %s77 = sphi 0, %s76
    %s93 = sphi 0, %s77
    %s97 = sphi 0, %s97
    %s99 = sphi 0, %s97
    %s100 = sphi 0, %s99
    %s114 = sphi 0, %s100
    %s118 = sphi 0, %s118
    %s120 = sphi 0, %s118
    %s121 = sphi 0, %s120
    %s135 = sphi 0, %s121
    %s139 = sphi 0, %s139
    %s141 = sphi 0, %s139
    %s142 = sphi 0, %s141
    %s156 = sphi 0, %s142
    %s160 = sphi 0, %s160
    %s162 = sphi 0, %s160
    %s163 = sphi 0, %s162
    %s177 = sphi 0, %s163
    %s181 = sphi 0, %s181
    %s183 = sphi 0, %s181
    %s184 = sphi 0, %s183
    %s198 = sphi 0, %s184
    %s202 = sphi 0, %s202
    %s204 = sphi 0, %s202
    %s205 = sphi 0, %s204
    %s219 = sphi 0, %s205
    %s223 = sphi 0, %s223
    %s225 = sphi 0, %s223
    %s226 = sphi 0, %s225
    %s240 = sphi 0, %s226
    %s244 = sphi 0, %s244
    %s246 = sphi 0, %s244
    %s247 = sphi 0, %s246
    %s261 = sphi 0, %s247
    %s265 = sphi 0, %s265
    %s267 = sphi 0, %s265
    %s268 = sphi 0, %s267
    %s282 = sphi 0, %s268
    %s286 = sphi 0, %s286
    %s288 = sphi 0, %s286
    %s289 = sphi 0, %s288
    %s303 = sphi 0, %s289
    %s307 = sphi 0, %s307
    %s309 = sphi 0, %s307
    %s310 = sphi 0, %s309
    %s324 = sphi 0, %s310
    %s328 = sphi 0, %s328
    %s330 = sphi 0, %s328
    %s331 = sphi 0, %s330
    %s345 = sphi 0, %s331
    %s349 = sphi 0, %s349
    %s351 = sphi 0, %s349
    %s352 = sphi 0, %s351
    %s366 = sphi 0, %s352
    %s374 = sphi 0, %s376
    %s377 = sphi 0, %s374
    %s378 = sphi 0, %s377
    %s394 = sphi 0, %s378
  $region4: #{predictor_forward.1} parent=0 // loop_header_branch
    %24 = sbr.rel (%p22) target = $region8
  $region5: #{predictor_forward.1} parent=0 // loop_body
    %s26 = ssub.s32 %s21, 1
    %s27 = ssub.s32 %s21, 2
    %s34 = sadd.s32 1, %s29
    %p35 = scmp.ge.s32.totalorder %s34, 2
    %s36 = scalar_select %p35, 0, %s34
    %s37 = sadd.s32 1, %s28
    %s38 = scalar_select %p35, %s37, %s28
    %p39 = scmp.ge.s32.totalorder %s38, 1
    %s40 = scalar_select %p39, 0, %s38
    %s41 = ssub.s32 %s29, %s36
    %s42 = ssub.s32 %s28, %s40
    %s43 = sor.u32 %s41, %s42
    %p44 = scmp.eq.s32.totalorder %s43, 0
    %s46 = sadd.s32 %s45, 1
    %s47 = scalar_select %p44, %s45, %s46
    %p50 = pneg %p44
    %p51 = scmp.eq.s32.totalorder %s21, 1
    %p52 = por %p50, %p51
    %p53 = scmp.ne.s32.totalorder %s45, %s48
    %p54 = scmp.eq.s32.totalorder %s21, 0
    %p55 = por %p53, %p54
    %p56 = scmp.ne.s32.totalorder %s45, %s48
    %p57 = scmp.eq.s32.totalorder %s26, 1
    %p58 = por %p56, %p57
    %p59 = scmp.ne.s32.totalorder %s48, %s49
    %p60 = scmp.eq.s32.totalorder %s26, 0
    %p61 = por %p59, %p60
    %p62 = scmp.ne.s32.totalorder %s48, %s49
    %p63 = scmp.eq.s32.totalorder %s27, 1
    %p64 = por %p62, %p63
    %p66 = scmp.ne.s32.totalorder %s49, %s65
    %p67 = scmp.eq.s32.totalorder %s27, 0
    %p68 = por %p66, %p67
    %s69 = ssub.s32 %s29, %s36
    %s70 = ssub.s32 %s28, %s40
    %s71 = sor.u32 %s69, %s70
    %p72 = scmp.eq.s32.totalorder %s71, 0
    %s74 = sadd.s32 %s73, 1
    %s75 = scalar_select %p72, %s73, %s74
    %p78 = pneg %p72
    %p79 = scmp.eq.s32.totalorder %s21, 1
    %p80 = por %p78, %p79
    %p81 = scmp.ne.s32.totalorder %s73, %s76
    %p82 = scmp.eq.s32.totalorder %s21, 0
    %p83 = por %p81, %p82
    %p84 = scmp.ne.s32.totalorder %s73, %s76
    %p85 = scmp.eq.s32.totalorder %s26, 1
    %p86 = por %p84, %p85
    %p87 = scmp.ne.s32.totalorder %s76, %s77
    %p88 = scmp.eq.s32.totalorder %s26, 0
    %p89 = por %p87, %p88
    %p90 = scmp.ne.s32.totalorder %s76, %s77
    %p91 = scmp.eq.s32.totalorder %s27, 1
    %p92 = por %p90, %p91
    %p94 = scmp.ne.s32.totalorder %s77, %s93
    %p95 = scmp.eq.s32.totalorder %s27, 0
    %p96 = por %p94, %p95
    %s98 = sadd.s32 %s97, 1
    %p101 = scmp.eq.s32.totalorder %s21, 1
    %p102 = scmp.ne.s32.totalorder %s97, %s99
    %p103 = scmp.eq.s32.totalorder %s21, 0
    %p104 = por %p102, %p103
    %p105 = scmp.ne.s32.totalorder %s97, %s99
    %p106 = scmp.eq.s32.totalorder %s26, 1
    %p107 = por %p105, %p106
    %p108 = scmp.ne.s32.totalorder %s99, %s100
    %p109 = scmp.eq.s32.totalorder %s26, 0
    %p110 = por %p108, %p109
    %p111 = scmp.ne.s32.totalorder %s99, %s100
    %p112 = scmp.eq.s32.totalorder %s27, 1
    %p113 = por %p111, %p112
    %p115 = scmp.ne.s32.totalorder %s100, %s114
    %p116 = scmp.eq.s32.totalorder %s27, 0
    %p117 = por %p115, %p116
    %s119 = sadd.s32 %s118, 1
    %p122 = scmp.eq.s32.totalorder %s21, 1
    %p123 = scmp.ne.s32.totalorder %s118, %s120
    %p124 = scmp.eq.s32.totalorder %s21, 0
    %p125 = por %p123, %p124
    %p126 = scmp.ne.s32.totalorder %s118, %s120
    %p127 = scmp.eq.s32.totalorder %s26, 1
    %p128 = por %p126, %p127
    %p129 = scmp.ne.s32.totalorder %s120, %s121
    %p130 = scmp.eq.s32.totalorder %s26, 0
    %p131 = por %p129, %p130
    %p132 = scmp.ne.s32.totalorder %s120, %s121
    %p133 = scmp.eq.s32.totalorder %s27, 1
    %p134 = por %p132, %p133
    %p136 = scmp.ne.s32.totalorder %s121, %s135
    %p137 = scmp.eq.s32.totalorder %s27, 0
    %p138 = por %p136, %p137
    %s140 = sadd.s32 %s139, 1
    %p143 = scmp.eq.s32.totalorder %s21, 1
    %p144 = scmp.ne.s32.totalorder %s139, %s141
    %p145 = scmp.eq.s32.totalorder %s21, 0
    %p146 = por %p144, %p145
    %p147 = scmp.ne.s32.totalorder %s139, %s141
    %p148 = scmp.eq.s32.totalorder %s26, 1
    %p149 = por %p147, %p148
    %p150 = scmp.ne.s32.totalorder %s141, %s142
    %p151 = scmp.eq.s32.totalorder %s26, 0
    %p152 = por %p150, %p151
    %p153 = scmp.ne.s32.totalorder %s141, %s142
    %p154 = scmp.eq.s32.totalorder %s27, 1
    %p155 = por %p153, %p154
    %p157 = scmp.ne.s32.totalorder %s142, %s156
    %p158 = scmp.eq.s32.totalorder %s27, 0
    %p159 = por %p157, %p158
    %s161 = sadd.s32 %s160, 1
    %p164 = scmp.eq.s32.totalorder %s21, 1
    %p165 = scmp.ne.s32.totalorder %s160, %s162
    %p166 = scmp.eq.s32.totalorder %s21, 0
    %p167 = por %p165, %p166
    %p168 = scmp.ne.s32.totalorder %s160, %s162
    %p169 = scmp.eq.s32.totalorder %s26, 1
    %p170 = por %p168, %p169
    %p171 = scmp.ne.s32.totalorder %s162, %s163
    %p172 = scmp.eq.s32.totalorder %s26, 0
    %p173 = por %p171, %p172
    %p174 = scmp.ne.s32.totalorder %s162, %s163
    %p175 = scmp.eq.s32.totalorder %s27, 1
    %p176 = por %p174, %p175
    %p178 = scmp.ne.s32.totalorder %s163, %s177
    %p179 = scmp.eq.s32.totalorder %s27, 0
    %p180 = por %p178, %p179
    %s182 = sadd.s32 %s181, 1
    %p185 = scmp.eq.s32.totalorder %s21, 1
    %p186 = scmp.ne.s32.totalorder %s181, %s183
    %p187 = scmp.eq.s32.totalorder %s21, 0
    %p188 = por %p186, %p187
    %p189 = scmp.ne.s32.totalorder %s181, %s183
    %p190 = scmp.eq.s32.totalorder %s26, 1
    %p191 = por %p189, %p190
    %p192 = scmp.ne.s32.totalorder %s183, %s184
    %p193 = scmp.eq.s32.totalorder %s26, 0
    %p194 = por %p192, %p193
    %p195 = scmp.ne.s32.totalorder %s183, %s184
    %p196 = scmp.eq.s32.totalorder %s27, 1
    %p197 = por %p195, %p196
    %p199 = scmp.ne.s32.totalorder %s184, %s198
    %p200 = scmp.eq.s32.totalorder %s27, 0
    %p201 = por %p199, %p200
    %s203 = sadd.s32 %s202, 1
    %p206 = scmp.eq.s32.totalorder %s21, 1
    %p207 = scmp.ne.s32.totalorder %s202, %s204
    %p208 = scmp.eq.s32.totalorder %s21, 0
    %p209 = por %p207, %p208
    %p210 = scmp.ne.s32.totalorder %s202, %s204
    %p211 = scmp.eq.s32.totalorder %s26, 1
    %p212 = por %p210, %p211
    %p213 = scmp.ne.s32.totalorder %s204, %s205
    %p214 = scmp.eq.s32.totalorder %s26, 0
    %p215 = por %p213, %p214
    %p216 = scmp.ne.s32.totalorder %s204, %s205
    %p217 = scmp.eq.s32.totalorder %s27, 1
    %p218 = por %p216, %p217
    %p220 = scmp.ne.s32.totalorder %s205, %s219
    %p221 = scmp.eq.s32.totalorder %s27, 0
    %p222 = por %p220, %p221
    %s224 = sadd.s32 %s223, 1
    %p227 = scmp.eq.s32.totalorder %s21, 1
    %p228 = scmp.ne.s32.totalorder %s223, %s225
    %p229 = scmp.eq.s32.totalorder %s21, 0
    %p230 = por %p228, %p229
    %p231 = scmp.ne.s32.totalorder %s223, %s225
    %p232 = scmp.eq.s32.totalorder %s26, 1
    %p233 = por %p231, %p232
    %p234 = scmp.ne.s32.totalorder %s225, %s226
    %p235 = scmp.eq.s32.totalorder %s26, 0
    %p236 = por %p234, %p235
    %p237 = scmp.ne.s32.totalorder %s225, %s226
    %p238 = scmp.eq.s32.totalorder %s27, 1
    %p239 = por %p237, %p238
    %p241 = scmp.ne.s32.totalorder %s226, %s240
    %p242 = scmp.eq.s32.totalorder %s27, 0
    %p243 = por %p241, %p242
    %s245 = sadd.s32 %s244, 1
    %p248 = scmp.eq.s32.totalorder %s21, 1
    %p249 = scmp.ne.s32.totalorder %s244, %s246
    %p250 = scmp.eq.s32.totalorder %s21, 0
    %p251 = por %p249, %p250
    %p252 = scmp.ne.s32.totalorder %s244, %s246
    %p253 = scmp.eq.s32.totalorder %s26, 1
    %p254 = por %p252, %p253
    %p255 = scmp.ne.s32.totalorder %s246, %s247
    %p256 = scmp.eq.s32.totalorder %s26, 0
    %p257 = por %p255, %p256
    %p258 = scmp.ne.s32.totalorder %s246, %s247
    %p259 = scmp.eq.s32.totalorder %s27, 1
    %p260 = por %p258, %p259
    %p262 = scmp.ne.s32.totalorder %s247, %s261
    %p263 = scmp.eq.s32.totalorder %s27, 0
    %p264 = por %p262, %p263
    %s266 = sadd.s32 %s265, 1
    %p269 = scmp.eq.s32.totalorder %s21, 1
    %p270 = scmp.ne.s32.totalorder %s265, %s267
    %p271 = scmp.eq.s32.totalorder %s21, 0
    %p272 = por %p270, %p271
    %p273 = scmp.ne.s32.totalorder %s265, %s267
    %p274 = scmp.eq.s32.totalorder %s26, 1
    %p275 = por %p273, %p274
    %p276 = scmp.ne.s32.totalorder %s267, %s268
    %p277 = scmp.eq.s32.totalorder %s26, 0
    %p278 = por %p276, %p277
    %p279 = scmp.ne.s32.totalorder %s267, %s268
    %p280 = scmp.eq.s32.totalorder %s27, 1
    %p281 = por %p279, %p280
    %p283 = scmp.ne.s32.totalorder %s268, %s282
    %p284 = scmp.eq.s32.totalorder %s27, 0
    %p285 = por %p283, %p284
    %s287 = sadd.s32 %s286, 1
    %p290 = scmp.eq.s32.totalorder %s21, 1
    %p291 = scmp.ne.s32.totalorder %s286, %s288
    %p292 = scmp.eq.s32.totalorder %s21, 0
    %p293 = por %p291, %p292
    %p294 = scmp.ne.s32.totalorder %s286, %s288
    %p295 = scmp.eq.s32.totalorder %s26, 1
    %p296 = por %p294, %p295
    %p297 = scmp.ne.s32.totalorder %s288, %s289
    %p298 = scmp.eq.s32.totalorder %s26, 0
    %p299 = por %p297, %p298
    %p300 = scmp.ne.s32.totalorder %s288, %s289
    %p301 = scmp.eq.s32.totalorder %s27, 1
    %p302 = por %p300, %p301
    %p304 = scmp.ne.s32.totalorder %s289, %s303
    %p305 = scmp.eq.s32.totalorder %s27, 0
    %p306 = por %p304, %p305
    %s308 = sadd.s32 %s307, 1
    %p311 = scmp.eq.s32.totalorder %s21, 1
    %p312 = scmp.ne.s32.totalorder %s307, %s309
    %p313 = scmp.eq.s32.totalorder %s21, 0
    %p314 = por %p312, %p313
    %p315 = scmp.ne.s32.totalorder %s307, %s309
    %p316 = scmp.eq.s32.totalorder %s26, 1
    %p317 = por %p315, %p316
    %p318 = scmp.ne.s32.totalorder %s309, %s310
    %p319 = scmp.eq.s32.totalorder %s26, 0
    %p320 = por %p318, %p319
    %p321 = scmp.ne.s32.totalorder %s309, %s310
    %p322 = scmp.eq.s32.totalorder %s27, 1
    %p323 = por %p321, %p322
    %p325 = scmp.ne.s32.totalorder %s310, %s324
    %p326 = scmp.eq.s32.totalorder %s27, 0
    %p327 = por %p325, %p326
    %s329 = sadd.s32 %s328, 1
    %p332 = scmp.eq.s32.totalorder %s21, 1
    %p333 = scmp.ne.s32.totalorder %s328, %s330
    %p334 = scmp.eq.s32.totalorder %s21, 0
    %p335 = por %p333, %p334
    %p336 = scmp.ne.s32.totalorder %s328, %s330
    %p337 = scmp.eq.s32.totalorder %s26, 1
    %p338 = por %p336, %p337
    %p339 = scmp.ne.s32.totalorder %s330, %s331
    %p340 = scmp.eq.s32.totalorder %s26, 0
    %p341 = por %p339, %p340
    %p342 = scmp.ne.s32.totalorder %s330, %s331
    %p343 = scmp.eq.s32.totalorder %s27, 1
    %p344 = por %p342, %p343
    %p346 = scmp.ne.s32.totalorder %s331, %s345
    %p347 = scmp.eq.s32.totalorder %s27, 0
    %p348 = por %p346, %p347
    %s350 = sadd.s32 %s349, 1
    %p353 = scmp.eq.s32.totalorder %s21, 1
    %p354 = scmp.ne.s32.totalorder %s349, %s351
    %p355 = scmp.eq.s32.totalorder %s21, 0
    %p356 = por %p354, %p355
    %p357 = scmp.ne.s32.totalorder %s349, %s351
    %p358 = scmp.eq.s32.totalorder %s26, 1
    %p359 = por %p357, %p358
    %p360 = scmp.ne.s32.totalorder %s351, %s352
    %p361 = scmp.eq.s32.totalorder %s26, 0
    %p362 = por %p360, %p361
    %p363 = scmp.ne.s32.totalorder %s351, %s352
    %p364 = scmp.eq.s32.totalorder %s27, 1
    %p365 = por %p363, %p364
    %p367 = scmp.ne.s32.totalorder %s352, %s366
    %p368 = scmp.eq.s32.totalorder %s27, 0
    %p369 = por %p367, %p368
    %s370 = ssub.s32 %s29, %s36
    %s371 = ssub.s32 %s28, %s40
    %s372 = sor.u32 %s370, %s371
    %p373 = scmp.eq.s32.totalorder %s372, 0
    %s375 = sadd.s32 %s374, 1
    %s376 = scalar_select %p373, %s374, %s375
    %p379 = pneg %p373
    %p380 = scmp.eq.s32.totalorder %s21, 1
    %p381 = por %p379, %p380
    %p382 = scmp.ne.s32.totalorder %s374, %s377
    %p383 = scmp.eq.s32.totalorder %s21, 0
    %p384 = por %p382, %p383
    %p385 = scmp.ne.s32.totalorder %s374, %s377
    %p386 = scmp.eq.s32.totalorder %s26, 1
    %p387 = por %p385, %p386
    %p388 = scmp.ne.s32.totalorder %s377, %s378
    %p389 = scmp.eq.s32.totalorder %s26, 0
    %p390 = por %p388, %p389
    %p391 = scmp.ne.s32.totalorder %s377, %s378
    %p392 = scmp.eq.s32.totalorder %s27, 1
    %p393 = por %p391, %p392
    %p395 = scmp.ne.s32.totalorder %s378, %s394
    %p396 = scmp.eq.s32.totalorder %s27, 0
    %p397 = por %p395, %p396
    %p398 = scmp.le.s32.totalorder 1, %s21
    %p399 = scmp.lt.s32.totalorder %s21, 3
    %p400 = pnand %p398, %p399
    %p401 = pneg %p400
    // Predicated region
    $region9: #{predictor_forward.1} parent=5 // pred_check
      _
    $region10: #{predictor_forward.1} parent=5 // pred_check_branch
      %403 = sbr.rel (%p400) target = $region12
    $region11: #{predictor_forward.1} parent=5 // pred_region
      %s404 = ssub.s32 %s21, 1
      // Predicated region
      $region13: #{predictor_forward.1} parent=11 // pred_check
        %p405 = pneg %p110
      $region14: #{predictor_forward.1} parent=11 // pred_check_branch
        %407 = sbr.rel (%p405) target = $region16
      $region15: #{predictor_forward.1} parent=11 // pred_region
        _
      $region16: #{predictor_forward.1} parent=11 // pred_fallthru
        _
      // Predicated region
      $region17: #{predictor_forward.1} parent=11 // pred_check
        %p408 = pneg %p131
      $region18: #{predictor_forward.1} parent=11 // pred_check_branch
        %410 = sbr.rel (%p408) target = $region20
      $region19: #{predictor_forward.1} parent=11 // pred_region
        _
      $region20: #{predictor_forward.1} parent=11 // pred_fallthru
        _
      // Predicated region
      $region21: #{predictor_forward.1} parent=11 // pred_check
        %p411 = pneg %p152
      $region22: #{predictor_forward.1} parent=11 // pred_check_branch
        %413 = sbr.rel (%p411) target = $region24
      $region23: #{predictor_forward.1} parent=11 // pred_region
        _
      $region24: #{predictor_forward.1} parent=11 // pred_fallthru
        _
      // Predicated region
      $region25: #{predictor_forward.1} parent=11 // pred_check
        %p414 = pneg %p173
      $region26: #{predictor_forward.1} parent=11 // pred_check_branch
        %416 = sbr.rel (%p414) target = $region28
      $region27: #{predictor_forward.1} parent=11 // pred_region
        _
      $region28: #{predictor_forward.1} parent=11 // pred_fallthru
        _
      // Predicated region
      $region29: #{predictor_forward.1} parent=11 // pred_check
        %p417 = pneg %p194
      $region30: #{predictor_forward.1} parent=11 // pred_check_branch
        %419 = sbr.rel (%p417) target = $region32
      $region31: #{predictor_forward.1} parent=11 // pred_region
        _
      $region32: #{predictor_forward.1} parent=11 // pred_fallthru
        _
      // Predicated region
      $region33: #{predictor_forward.1} parent=11 // pred_check
        %p420 = pneg %p215
      $region34: #{predictor_forward.1} parent=11 // pred_check_branch
        %422 = sbr.rel (%p420) target = $region36
      $region35: #{predictor_forward.1} parent=11 // pred_region
        _
      $region36: #{predictor_forward.1} parent=11 // pred_fallthru
        _
      // Predicated region
      $region37: #{predictor_forward.1} parent=11 // pred_check
        %p423 = pneg %p236
      $region38: #{predictor_forward.1} parent=11 // pred_check_branch
        %425 = sbr.rel (%p423) target = $region40
      $region39: #{predictor_forward.1} parent=11 // pred_region
        _
      $region40: #{predictor_forward.1} parent=11 // pred_fallthru
        _
      // Predicated region
      $region41: #{predictor_forward.1} parent=11 // pred_check
        %p426 = pneg %p257
      $region42: #{predictor_forward.1} parent=11 // pred_check_branch
        %428 = sbr.rel (%p426) target = $region44
      $region43: #{predictor_forward.1} parent=11 // pred_region
        _
      $region44: #{predictor_forward.1} parent=11 // pred_fallthru
        _
      // Predicated region
      $region45: #{predictor_forward.1} parent=11 // pred_check
        %p429 = pneg %p278
      $region46: #{predictor_forward.1} parent=11 // pred_check_branch
        %431 = sbr.rel (%p429) target = $region48
      $region47: #{predictor_forward.1} parent=11 // pred_region
        _
      $region48: #{predictor_forward.1} parent=11 // pred_fallthru
        _
      // Predicated region
      $region49: #{predictor_forward.1} parent=11 // pred_check
        %p432 = pneg %p299
      $region50: #{predictor_forward.1} parent=11 // pred_check_branch
        %434 = sbr.rel (%p432) target = $region52
      $region51: #{predictor_forward.1} parent=11 // pred_region
        _
      $region52: #{predictor_forward.1} parent=11 // pred_fallthru
        _
      // Predicated region
      $region53: #{predictor_forward.1} parent=11 // pred_check
        %p435 = pneg %p320
      $region54: #{predictor_forward.1} parent=11 // pred_check_branch
        %437 = sbr.rel (%p435) target = $region56
      $region55: #{predictor_forward.1} parent=11 // pred_region
        _
      $region56: #{predictor_forward.1} parent=11 // pred_fallthru
        _
      // Predicated region
      $region57: #{predictor_forward.1} parent=11 // pred_check
        %p438 = pneg %p341
      $region58: #{predictor_forward.1} parent=11 // pred_check_branch
        %440 = sbr.rel (%p438) target = $region60
      $region59: #{predictor_forward.1} parent=11 // pred_region
        _
      $region60: #{predictor_forward.1} parent=11 // pred_fallthru
        _
      // Predicated region
      $region61: #{predictor_forward.1} parent=11 // pred_check
        %p441 = pneg %p362
      $region62: #{predictor_forward.1} parent=11 // pred_check_branch
        %443 = sbr.rel (%p441) target = $region64
      $region63: #{predictor_forward.1} parent=11 // pred_region
        _
      $region64: #{predictor_forward.1} parent=11 // pred_fallthru
        _
    $region12: #{predictor_forward.1} parent=5 // pred_fallthru
      _
    %p444 = scmp.lt.s32.totalorder %s21, 2
    // Predicated region
    $region65: #{predictor_forward.1} parent=5 // pred_check
      %p445 = pneg %p444
    $region66: #{predictor_forward.1} parent=5 // pred_check_branch
      %447 = sbr.rel (%p445) target = $region68
    $region67: #{predictor_forward.1} parent=5 // pred_region
      // Predicated region
      $region69: #{predictor_forward.1} parent=67 // pred_check
        %p448 = pneg %p55
      $region70: #{predictor_forward.1} parent=67 // pred_check_branch
        %450 = sbr.rel (%p448) target = $region72
      $region71: #{predictor_forward.1} parent=67 // pred_region
        %p451 = scmp.lt.s32.totalorder %s29, 1
        %s452 = scalar_select %p451, %s29, 1
        %p453 = scmp.lt.s32.totalorder %s28, 0
        %s454 = scalar_select %p453, %s28, 0
        %s455 = sadd.s32 %s454, %s452
        %s456 = smul.addr %s455, 8
        %s457 = scalar_lea.vmem %s0, %s456
      $region72: #{predictor_forward.1} parent=67 // pred_fallthru
        _
      // Predicated region
      $region73: #{predictor_forward.1} parent=67 // pred_check
        %p458 = pneg %p83
      $region74: #{predictor_forward.1} parent=67 // pred_check_branch
        %460 = sbr.rel (%p458) target = $region76
      $region75: #{predictor_forward.1} parent=67 // pred_region
        %p461 = scmp.lt.s32.totalorder %s29, 1
        %s462 = scalar_select %p461, %s29, 1
        %p463 = scmp.lt.s32.totalorder %s28, 0
        %s464 = scalar_select %p463, %s28, 0
        %s465 = sadd.s32 %s464, %s462
        %s466 = smul.addr %s465, 8
        %s467 = scalar_lea.vmem %s1, %s466
      $region76: #{predictor_forward.1} parent=67 // pred_fallthru
        _
    $region68: #{predictor_forward.1} parent=5 // pred_fallthru
      _
    %p468 = scmp.le.s32.totalorder 1, %s21
    %p469 = scmp.lt.s32.totalorder %s21, 3
    %p470 = pnand %p468, %p469
    %p471 = pneg %p470
    // Predicated region
    $region77: #{predictor_forward.1} parent=5 // pred_check
      _
    $region78: #{predictor_forward.1} parent=5 // pred_check_branch
      %473 = sbr.rel (%p470) target = $region80
    $region79: #{predictor_forward.1} parent=5 // pred_region
      %s474 = ssub.s32 %s21, 1
      %p475 = scmp.lt.s32.totalorder %s31, 1
      %s476 = scalar_select %p475, %s31, 1
      %p477 = scmp.lt.s32.totalorder %s30, 0
      %s478 = scalar_select %p477, %s30, 0
      %s479 = sadd.s32 %s478, %s476
      %s480 = smul.addr %s479, 8
      %s481 = scalar_lea.vmem %s0, %s480
      %p482 = pneg %p61
      %p483 = pneg %p58
      %p484 = scmp.lt.s32.totalorder %s31, 1
      %s485 = scalar_select %p484, %s31, 1
      %p486 = scmp.lt.s32.totalorder %s30, 0
      %s487 = scalar_select %p486, %s30, 0
      %s488 = sadd.s32 %s487, %s485
      %s489 = smul.addr %s488, 8
      %s490 = scalar_lea.vmem %s1, %s489
      %p491 = pneg %p89
      %p492 = pneg %p86
      %p493 = pneg %p110
      %p494 = pneg %p107
      %p495 = pneg %p131
      %p496 = pneg %p128
      %p497 = pneg %p152
      %p498 = pneg %p149
      %p499 = pneg %p173
      %p500 = pneg %p170
      %p501 = pneg %p194
      %p502 = pneg %p191
      %p503 = pneg %p215
      %p504 = pneg %p212
      %p505 = pneg %p236
      %p506 = pneg %p233
      %p507 = pneg %p257
      %p508 = pneg %p254
      %p509 = pneg %p278
      %p510 = pneg %p275
      %p511 = pneg %p299
      %p512 = pneg %p296
      %p513 = pneg %p320
      %p514 = pneg %p317
      %p515 = pneg %p341
      %p516 = pneg %p338
      %p517 = pneg %p362
      %p518 = pneg %p359
      %p519 = pneg %p390
      %p520 = pneg %p387
      %p521 = scmp.lt.s32.totalorder %s31, 1
      %s522 = scalar_select %p521, %s31, 1
      %p523 = scmp.lt.s32.totalorder %s30, 0
      %s524 = scalar_select %p523, %s30, 0
      %s525 = sadd.s32 %s524, %s522
      %s526 = smul.addr %s525, 8
      %s527 = scalar_lea.vmem %s15, %s526
      %p528 = scmp.lt.s32.totalorder %s31, 1
      %s529 = scalar_select %p528, %s31, 1
      %p530 = scmp.lt.s32.totalorder %s30, 0
      %s531 = scalar_select %p530, %s30, 0
      %s532 = sadd.s32 %s531, %s529
      %s533 = smul.addr %s532, 8
      %s534 = scalar_lea.vmem %s0, %s533
      %p535 = scmp.lt.s32.totalorder %s31, 1
      %s536 = scalar_select %p535, %s31, 1
      %p537 = scmp.lt.s32.totalorder %s30, 0
      %s538 = scalar_select %p537, %s30, 0
      %s539 = sadd.s32 %s538, %s536
      %s540 = smul.addr %s539, 8
      %s541 = scalar_lea.vmem %s1, %s540
      %p542 = scmp.lt.s32.totalorder %s31, 1
      %s543 = scalar_select %p542, %s31, 1
      %p544 = scmp.lt.s32.totalorder %s30, 0
      %s545 = scalar_select %p544, %s30, 0
      %s546 = sadd.s32 %s545, %s543
      %s547 = smul.addr %s546, 8
      %s548 = scalar_lea.vmem %s15, %s547
      %p550 = scmp.eq.s32.totalorder %s31, 0
      // Predicated region
      $region81: #{predictor_forward.1} parent=79 // pred_check
        %p551 = pneg %p550
      $region82: #{predictor_forward.1} parent=79 // pred_check_branch
        %553 = sbr.rel (%p551) target = $region84
      $region83: #{predictor_forward.1} parent=79 // pred_region
        %vm554 = vcmask 523264
        %555 = vst.msk [vmem:[#allocation2] sm:$0xff] %vm554, 0.0
      $region84: #{predictor_forward.1} parent=79 // pred_fallthru
        _
      %v556 = vld [vmem:[%s534] sm:$0xff]
      %v557 = vld [vmem:[%s541] sm:$0xff]
      %v558 = vld [vmem:[%s2] sm:$0x1]
      %560 = vset.pattern.permute.xlu0 0
      %561 = vperm.xlu0 %560, %v557
      %v562 = vpop.permute.xlu0 %561
      %v565 = vlaneseq
      %v566 = vshrl.u32 %v565, 7
      %v567 = vsub.s32 0, %v566
      %v568 = vrot.slane %v558, %v567
      %v570 = vmul.f32 %v562, %v568
      %v571 = vld [vmem:[%s3] sm:$0x1]
      %572 = vset.pattern.permute.xlu0 1
      %573 = vperm.xlu0 %572, %v557
      %v574 = vpop.permute.xlu0 %573
      %v577 = vlaneseq
      %v578 = vshrl.u32 %v577, 7
      %v579 = vsub.s32 0, %v578
      %v580 = vrot.slane %v571, %v579
      %v582 = vmul.f32 %v574, %v580
      %v583 = vadd.f32 %v570, %v582
      %v584 = vld [vmem:[%s4] sm:$0x1]
      %v586 = vlaneseq
      %v587 = vshrl.u32 %v586, 7
      %v588 = vsub.s32 0, %v587
      %v589 = vrot.slane %v584, %v588
      %v591 = vadd.f32 %v583, %v589
      %v592 = vmax.f32 %v591, 0.0
      %v593 = vpack.c.bf16 %v592, %v592
      %v594 = vld [vmem:[%s5] sm:$0xf]
      %v595 = vld [vmem:[%s5 + $0x4] sm:$0xf]
      %v596 = vld [vmem:[%s6] sm:$0x1]
      %v598 = vlaneseq
      %v599 = vshrl.u32 %v598, 7
      %v600 = vsub.s32 0, %v599
      %v601 = vrot.slane %v596, %v600
      %v605 = vunpack.c.l.b16 %v594
      %v606 = vunpack.c.l.b16 %v595
      %v607 = vpack.c.b16 %v606, %v605
      %vm609 = vcmask 130048
      %v611 = vsel %vm609, %v593, 0
      %613 = vmatprep.subr.bf16.mxu0 0
      %614 = vmatpush1.bf16.msra.mxu0 %v607
      %615 = vmatprep.subr.bf16.mxu0 0
      %616 = vmatpush1.bf16.msra.mxu0 0
      %617 = vmatprep.subr.bf16.mxu0 0
      %618 = vmatpush1.bf16.msra.mxu0 0
      %619 = vmatprep.subr.bf16.mxu0 0
      %620 = vmatpush1.bf16.msra.mxu0 0
      %621 = vmatprep.subr.bf16.mxu0 0
      %622 = vmatpush1.bf16.msra.mxu0 0
      %623 = vmatprep.subr.bf16.mxu0 0
      %624 = vmatpush1.bf16.msra.mxu0 0
      %625 = vmatprep.subr.bf16.mxu0 0
      %626 = vmatpush1.bf16.msra.mxu0 0
      %627 = vmatprep.subr.bf16.mxu0 0
      %628 = vmatpush1.bf16.msra.mxu0 0
      %629 = vmatprep.subr.bf16.mxu0 0
      %630 = vmatpush1.bf16.msra.mxu0 0
      %631 = vmatprep.subr.bf16.mxu0 0
      %632 = vmatpush1.bf16.msra.mxu0 0
      %633 = vmatprep.subr.bf16.mxu0 0
      %634 = vmatpush1.bf16.msra.mxu0 0
      %635 = vmatprep.subr.bf16.mxu0 0
      %636 = vmatpush1.bf16.msra.mxu0 0
      %637 = vmatprep.subr.bf16.mxu0 0
      %638 = vmatpush1.bf16.msra.mxu0 0
      %639 = vmatprep.subr.bf16.mxu0 0
      %640 = vmatpush1.bf16.msra.mxu0 0
      %641 = vmatprep.subr.bf16.mxu0 0
      %642 = vmatpush1.bf16.msra.mxu0 0
      %643 = vmatprep.subr.bf16.mxu0 0
      %644 = vmatpush1.bf16.msra.mxu0 0
      %645 = vmatprep.mubr.bf16.mxu0 0
      %646 = vmatmul.mubr.bf16.gmra.mrb[0].mxu0 %v611
      %v647 = vpop.f32.mrb[0].mxu0
      %v648 = vadd.f32 %v601, %v647
      %v649 = vpop.f32.mrb[0].mxu0
      %v650 = vpop.f32.mrb[0].mxu0
      %v651 = vpop.f32.mrb[0].mxu0
      %652 = vdwg.mxu0
      %vm653 = vcmask 261120
      %v654 = vsel %vm653, %v648, 0.0
      %655 = vadd.xlane.f32.xlu0 %v654
      %v656 = vpop.xlane.xlu0 %655
      %v657 = vrcp.pop 32.0
      %v658 = vmul.f32 %v656, %v657
      %v659 = vsub.f32 %v648, %v658
      %v660 = vmul.f32 %v659, %v659
      %v661 = vsel %vm653, %v660, 0.0
      %662 = vadd.xlane.f32.xlu0 %v661
      %v663 = vpop.xlane.xlu0 %662
      %v664 = vmul.f32 %v663, %v657
      %v665 = vadd.f32 %v664, 1e-05
      %v666 = vrsqrt.pop %v665
      %v667 = vmul.f32 %v659, %v666
      %v668 = vpack.c.bf16 %v667, %v667
      %v669 = vld [vmem:[%s7] sm:$0xf]
      %v670 = vld [vmem:[%s7 + $0x4] sm:$0xf]
      %v671 = vld [vmem:[%s7 + $0x8] sm:$0xf]
      %v672 = vld [vmem:[%s7 + $0xc] sm:$0xf]
      %v673 = vld [vmem:[%s8] sm:$0x1]
      %v675 = vlaneseq
      %v676 = vshrl.u32 %v675, 7
      %v677 = vsub.s32 0, %v676
      %v678 = vrot.slane %v673, %v677
      %v684 = vunpack.c.l.b16 %v669
      %v685 = vunpack.c.l.b16 %v670
      %v686 = vunpack.c.l.b16 %v671
      %v687 = vunpack.c.l.b16 %v672
      %v688 = vpack.c.b16 %v685, %v684
      %v689 = vpack.c.b16 %v687, %v686
      %v693 = vsel %vm653, %v668, 0
      %695 = vmatprep.subr.bf16.mxu0 0
      %696 = vmatpush1.bf16.msra.mxu0 %v688
      %697 = vmatprep.subr.bf16.mxu0 0
      %698 = vmatpush1.bf16.msra.mxu0 %v689
      %699 = vmatprep.subr.bf16.mxu0 0
      %700 = vmatpush1.bf16.msra.mxu0 0
      %701 = vmatprep.subr.bf16.mxu0 0
      %702 = vmatpush1.bf16.msra.mxu0 0
      %703 = vmatprep.subr.bf16.mxu0 0
      %704 = vmatpush1.bf16.msra.mxu0 0
      %705 = vmatprep.subr.bf16.mxu0 0
      %706 = vmatpush1.bf16.msra.mxu0 0
      %707 = vmatprep.subr.bf16.mxu0 0
      %708 = vmatpush1.bf16.msra.mxu0 0
      %709 = vmatprep.subr.bf16.mxu0 0
      %710 = vmatpush1.bf16.msra.mxu0 0
      %711 = vmatprep.subr.bf16.mxu0 0
      %712 = vmatpush1.bf16.msra.mxu0 0
      %713 = vmatprep.subr.bf16.mxu0 0
      %714 = vmatpush1.bf16.msra.mxu0 0
      %715 = vmatprep.subr.bf16.mxu0 0
      %716 = vmatpush1.bf16.msra.mxu0 0
      %717 = vmatprep.subr.bf16.mxu0 0
      %718 = vmatpush1.bf16.msra.mxu0 0
      %719 = vmatprep.subr.bf16.mxu0 0
      %720 = vmatpush1.bf16.msra.mxu0 0
      %721 = vmatprep.subr.bf16.mxu0 0
      %722 = vmatpush1.bf16.msra.mxu0 0
      %723 = vmatprep.subr.bf16.mxu0 0
      %724 = vmatpush1.bf16.msra.mxu0 0
      %725 = vmatprep.subr.bf16.mxu0 0
      %726 = vmatpush1.bf16.msra.mxu0 0
      %727 = vmatprep.mubr.bf16.mxu0 0
      %728 = vmatmul.mubr.bf16.gmra.mrb[0].mxu0 %v693
      %v729 = vpop.f32.mrb[0].mxu0
      %v730 = vadd.f32 %v678, %v729
      %v731 = vpop.f32.mrb[0].mxu0
      %v732 = vpop.f32.mrb[0].mxu0
      %v733 = vpop.f32.mrb[0].mxu0
      %734 = vdwg.mxu0
      %v735 = vadd.f32 %v556, %v730
      %v736 = vld [vmem:[#allocation2] sm:$0xff]
      %v737 = vpack.c.bf16 %v735, %v735
      %v738 = vld [vmem:[%s9] sm:$0xff]
      %v739 = vld [vmem:[%s9 + $0x8] sm:$0xff]
      %v740 = vld [vmem:[%s9 + $0x10] sm:$0xff]
      %v741 = vld [vmem:[%s9 + $0x18] sm:$0xff]
      %v742 = vld [vmem:[%s11] sm:$0x3]
      %v744 = vlaneseq
      %v745 = vshrl.u32 %v744, 7
      %v746 = vsub.s32 0, %v745
      %v747 = vrot.slane %v742, %v746
      %v748 = vlaneseq
      %v749 = vshrl.u32 %v748, 7
      %v750 = vsub.s32 1, %v749
      %v751 = vrot.slane %v742, %v750
      %v758 = vunpack.c.l.b16 %v738
      %v759 = vunpack.c.h.b16 %v738
      %v760 = vunpack.c.l.b16 %v739
      %v761 = vunpack.c.h.b16 %v739
      %v762 = vunpack.c.l.b16 %v740
      %v763 = vunpack.c.h.b16 %v740
      %v764 = vunpack.c.l.b16 %v741
      %v765 = vunpack.c.h.b16 %v741
      %v766 = vpack.c.b16 %v760, %v758
      %v767 = vpack.c.b16 %v761, %v759
      %v768 = vpack.c.b16 %v764, %v762
      %v769 = vpack.c.b16 %v765, %v763
      %v775 = vsel %vm653, %v737, 0
      %777 = vmatprep.subr.bf16.mxu0 %v767
      %778 = vmatpush1.bf16.msra.mxu0 %v766
      %779 = vmatprep.subr.bf16.mxu0 %v769
      %780 = vmatpush1.bf16.msra.mxu0 %v768
      %781 = vmatprep.subr.bf16.mxu0 0
      %782 = vmatpush1.bf16.msra.mxu0 0
      %783 = vmatprep.subr.bf16.mxu0 0
      %784 = vmatpush1.bf16.msra.mxu0 0
      %785 = vmatprep.subr.bf16.mxu0 0
      %786 = vmatpush1.bf16.msra.mxu0 0
      %787 = vmatprep.subr.bf16.mxu0 0
      %788 = vmatpush1.bf16.msra.mxu0 0
      %789 = vmatprep.subr.bf16.mxu0 0
      %790 = vmatpush1.bf16.msra.mxu0 0
      %791 = vmatprep.subr.bf16.mxu0 0
      %792 = vmatpush1.bf16.msra.mxu0 0
      %793 = vmatprep.subr.bf16.mxu0 0
      %794 = vmatpush1.bf16.msra.mxu0 0
      %795 = vmatprep.subr.bf16.mxu0 0
      %796 = vmatpush1.bf16.msra.mxu0 0
      %797 = vmatprep.subr.bf16.mxu0 0
      %798 = vmatpush1.bf16.msra.mxu0 0
      %799 = vmatprep.subr.bf16.mxu0 0
      %800 = vmatpush1.bf16.msra.mxu0 0
      %801 = vmatprep.subr.bf16.mxu0 0
      %802 = vmatpush1.bf16.msra.mxu0 0
      %803 = vmatprep.subr.bf16.mxu0 0
      %804 = vmatpush1.bf16.msra.mxu0 0
      %805 = vmatprep.subr.bf16.mxu0 0
      %806 = vmatpush1.bf16.msra.mxu0 0
      %807 = vmatprep.subr.bf16.mxu0 0
      %808 = vmatpush1.bf16.msra.mxu0 0
      %809 = vmatprep.mubr.bf16.mxu0 0
      %810 = vmatmul.mubr.bf16.gmra.mrb[0].mxu0 %v775
      %v811 = vpop.f32.mrb[0].mxu0
      %v812 = vadd.f32 %v747, %v811
      %v813 = vpop.f32.mrb[0].mxu0
      %v814 = vadd.f32 %v751, %v813
      %v815 = vpop.f32.mrb[0].mxu0
      %v816 = vpop.f32.mrb[0].mxu0
      %817 = vdwg.mxu0
      %v818 = vpack.c.bf16 %v736, %v736
      %v819 = vld [vmem:[%s10] sm:$0xff]
      %v820 = vld [vmem:[%s10 + $0x8] sm:$0xff]
      %v821 = vld [vmem:[%s10 + $0x10] sm:$0xff]
      %v822 = vld [vmem:[%s10 + $0x18] sm:$0xff]
      %v823 = vld [vmem:[%s10 + $0x20] sm:$0xff]
      %v824 = vld [vmem:[%s10 + $0x28] sm:$0xff]
      %v825 = vld [vmem:[%s10 + $0x30] sm:$0xff]
      %v826 = vld [vmem:[%s10 + $0x38] sm:$0xff]
      %v835 = vunpack.c.l.b16 %v819
      %v836 = vunpack.c.h.b16 %v819
      %v837 = vunpack.c.l.b16 %v820
      %v838 = vunpack.c.h.b16 %v820
      %v839 = vunpack.c.l.b16 %v821
      %v840 = vunpack.c.h.b16 %v821
      %v841 = vunpack.c.l.b16 %v822
      %v842 = vunpack.c.h.b16 %v822
      %v843 = vunpack.c.l.b16 %v823
      %v844 = vunpack.c.h.b16 %v823
      %v845 = vunpack.c.l.b16 %v824
      %v846 = vunpack.c.h.b16 %v824
      %v847 = vunpack.c.l.b16 %v825
      %v848 = vunpack.c.h.b16 %v825
      %v849 = vunpack.c.l.b16 %v826
      %v850 = vunpack.c.h.b16 %v826
      %v851 = vpack.c.b16 %v837, %v835
      %v852 = vpack.c.b16 %v838, %v836
      %v853 = vpack.c.b16 %v841, %v839
      %v854 = vpack.c.b16 %v842, %v840
      %v855 = vpack.c.b16 %v845, %v843
      %v856 = vpack.c.b16 %v846, %v844
      %v857 = vpack.c.b16 %v849, %v847
      %v858 = vpack.c.b16 %v850, %v848
      %vm867 = vcmask 523264
      %v869 = vsel %vm867, %v818, 0
      %871 = vmatprep.subr.bf16.mxu0 %v852
      %872 = vmatpush1.bf16.msra.mxu0 %v851
      %873 = vmatprep.subr.bf16.mxu0 %v854
      %874 = vmatpush1.bf16.msra.mxu0 %v853
      %875 = vmatprep.subr.bf16.mxu0 %v856
      %876 = vmatpush1.bf16.msra.mxu0 %v855
      %877 = vmatprep.subr.bf16.mxu0 %v858
      %878 = vmatpush1.bf16.msra.mxu0 %v857
      %879 = vmatprep.subr.bf16.mxu0 0
      %880 = vmatpush1.bf16.msra.mxu0 0
      %881 = vmatprep.subr.bf16.mxu0 0
      %882 = vmatpush1.bf16.msra.mxu0 0
      %883 = vmatprep.subr.bf16.mxu0 0
      %884 = vmatpush1.bf16.msra.mxu0 0
      %885 = vmatprep.subr.bf16.mxu0 0
      %886 = vmatpush1.bf16.msra.mxu0 0
      %887 = vmatprep.subr.bf16.mxu0 0
      %888 = vmatpush1.bf16.msra.mxu0 0
      %889 = vmatprep.subr.bf16.mxu0 0
      %890 = vmatpush1.bf16.msra.mxu0 0
      %891 = vmatprep.subr.bf16.mxu0 0
      %892 = vmatpush1.bf16.msra.mxu0 0
      %893 = vmatprep.subr.bf16.mxu0 0
      %894 = vmatpush1.bf16.msra.mxu0 0
      %895 = vmatprep.subr.bf16.mxu0 0
      %896 = vmatpush1.bf16.msra.mxu0 0
      %897 = vmatprep.subr.bf16.mxu0 0
      %898 = vmatpush1.bf16.msra.mxu0 0
      %899 = vmatprep.subr.bf16.mxu0 0
      %900 = vmatpush1.bf16.msra.mxu0 0
      %901 = vmatprep.subr.bf16.mxu0 0
      %902 = vmatpush1.bf16.msra.mxu0 0
      %903 = vmatprep.mubr.bf16.mxu0 0
      %904 = vmatmul.mubr.bf16.gmra.mrb[0].mxu0 %v869
      %v905 = vpop.f32.mrb[0].mxu0
      %v906 = vadd.f32 0.0, %v905
      %v907 = vpop.f32.mrb[0].mxu0
      %v908 = vadd.f32 0.0, %v907
      %v909 = vpop.f32.mrb[0].mxu0
      %v910 = vpop.f32.mrb[0].mxu0
      %911 = vdwg.mxu0
      %v912 = vadd.f32 %v812, %v906
      %v913 = vxor.u32 %v912, 2147483648
      %v914 = vmul.f32 %v913, 1.442695
      %v915 = vpow.pop %v914
      %v916 = vadd.f32 %v915, 1.0
      %v917 = vrcp.pop %v916
      %v918 = vmul.f32 1.0, %v917
      %v919 = vld [vmem:[%s12] sm:$0x1]
      %v921 = vlaneseq
      %v922 = vshrl.u32 %v921, 7
      %v923 = vsub.s32 0, %v922
      %v924 = vrot.slane %v919, %v923
      %v926 = vadd.f32 %v908, %v924
      %v927 = vmul.f32 %v918, %v926
      %v928 = vadd.f32 %v814, %v927
      %v929 = vtanh.pop %v928
      %v930 = vsub.f32 1.0, %v918
      %932 = vrot.lane.b32.xlu0 %v929, 64
      %v933 = vpop.permute.xlu0 %932
      %v935 = vmul.f32 %v930, %v933
      %937 = vrot.lane.b32.xlu0 %v736, 64
      %v938 = vpop.permute.xlu0 %937
      %v940 = vmul.f32 %v918, %v938
      %v941 = vadd.f32 %v935, %v940
      %943 = vrot.lane.b32.xlu0 %v941, 64
      %v944 = vpop.permute.xlu0 %943
      %946 = vst.msk [vmem:[#allocation2] sm:$0xff] %vm867, %v944
      %v947 = vpack.c.bf16 %v941, %v941
      %v948 = vld [vmem:[%s13] sm:$0xf]
      %v949 = vld [vmem:[%s13 + $0x4] sm:$0xf]
      %v950 = vld [vmem:[%s13 + $0x8] sm:$0xf]
      %v951 = vld [vmem:[%s13 + $0xc] sm:$0xf]
      %v952 = vld [vmem:[%s13 + $0x10] sm:$0xf]
      %v953 = vld [vmem:[%s13 + $0x14] sm:$0xf]
      %v954 = vld [vmem:[%s13 + $0x18] sm:$0xf]
      %v955 = vld [vmem:[%s13 + $0x1c] sm:$0xf]
      %v956 = vld [vmem:[%s14] sm:$0x1]
      %v958 = vlaneseq
      %v959 = vshrl.u32 %v958, 7
      %v960 = vsub.s32 0, %v959
      %v961 = vrot.slane %v956, %v960
      %964 = vrot.lane.b32.xlu0 %v947, 64
      %v965 = vpop.permute.xlu0 %964
      %v974 = vunpack.c.l.b16 %v948
      %v975 = vunpack.c.l.b16 %v949
      %v976 = vunpack.c.l.b16 %v950
      %v977 = vunpack.c.l.b16 %v951
      %v978 = vunpack.c.l.b16 %v952
      %v979 = vunpack.c.l.b16 %v953
      %v980 = vunpack.c.l.b16 %v954
      %v981 = vunpack.c.l.b16 %v955
      %v982 = vpack.c.b16 %v975, %v974
      %v983 = vpack.c.b16 %v977, %v976
      %v984 = vpack.c.b16 %v979, %v978
      %v985 = vpack.c.b16 %v981, %v980
      %v991 = vsel %vm867, %v965, 0
      %993 = vmatprep.subr.bf16.mxu0 0
      %994 = vmatpush1.bf16.msra.mxu0 %v982
      %995 = vmatprep.subr.bf16.mxu0 0
      %996 = vmatpush1.bf16.msra.mxu0 %v983
      %997 = vmatprep.subr.bf16.mxu0 0
      %998 = vmatpush1.bf16.msra.mxu0 %v984
      %999 = vmatprep.subr.bf16.mxu0 0
      %1000 = vmatpush1.bf16.msra.mxu0 %v985
      %1001 = vmatprep.subr.bf16.mxu0 0
      %1002 = vmatpush1.bf16.msra.mxu0 0
      %1003 = vmatprep.subr.bf16.mxu0 0
      %1004 = vmatpush1.bf16.msra.mxu0 0
      %1005 = vmatprep.subr.bf16.mxu0 0
      %1006 = vmatpush1.bf16.msra.mxu0 0
      %1007 = vmatprep.subr.bf16.mxu0 0
      %1008 = vmatpush1.bf16.msra.mxu0 0
      %1009 = vmatprep.subr.bf16.mxu0 0
      %1010 = vmatpush1.bf16.msra.mxu0 0
      %1011 = vmatprep.subr.bf16.mxu0 0
      %1012 = vmatpush1.bf16.msra.mxu0 0
      %1013 = vmatprep.subr.bf16.mxu0 0
      %1014 = vmatpush1.bf16.msra.mxu0 0
      %1015 = vmatprep.subr.bf16.mxu0 0
      %1016 = vmatpush1.bf16.msra.mxu0 0
      %1017 = vmatprep.subr.bf16.mxu0 0
      %1018 = vmatpush1.bf16.msra.mxu0 0
      %1019 = vmatprep.subr.bf16.mxu0 0
      %1020 = vmatpush1.bf16.msra.mxu0 0
      %1021 = vmatprep.subr.bf16.mxu0 0
      %1022 = vmatpush1.bf16.msra.mxu0 0
      %1023 = vmatprep.subr.bf16.mxu0 0
      %1024 = vmatpush1.bf16.msra.mxu0 0
      %1025 = vmatprep.mubr.bf16.mxu0 0
      %1026 = vmatmul.mubr.bf16.gmra.mrb[0].mxu0 %v991
      %v1027 = vpop.f32.mrb[0].mxu0
      %v1028 = vadd.f32 %v961, %v1027
      %v1029 = vpop.f32.mrb[0].mxu0
      %v1030 = vpop.f32.mrb[0].mxu0
      %v1031 = vpop.f32.mrb[0].mxu0
      %1032 = vdwg.mxu0
      %1033 = vst.msk [vmem:[%s548] sm:$0xff] %vm653, %v1028
      %p1034 = scmp.lt.s32.totalorder %s31, 1
      %s1035 = scalar_select %p1034, %s31, 1
      %p1036 = scmp.lt.s32.totalorder %s30, 0
      %s1037 = scalar_select %p1036, %s30, 0
      %s1038 = sadd.s32 %s1037, %s1035
      %s1039 = smul.addr %s1038, 8
      %s1040 = scalar_lea.vmem %s15, %s1039
      // Predicated region
      $region85: #{predictor_forward.1} parent=79 // pred_check
        %p1041 = pneg %p387
      $region86: #{predictor_forward.1} parent=79 // pred_check_branch
        %1043 = sbr.rel (%p1041) target = $region88
      $region87: #{predictor_forward.1} parent=79 // pred_region
        _
      $region88: #{predictor_forward.1} parent=79 // pred_fallthru
        _
    $region80: #{predictor_forward.1} parent=5 // pred_fallthru
      _
    %p1044 = scmp.le.s32.totalorder 2, %s21
    // Predicated region
    $region89: #{predictor_forward.1} parent=5 // pred_check
      %p1045 = pneg %p1044
    $region90: #{predictor_forward.1} parent=5 // pred_check_branch
      %1047 = sbr.rel (%p1045) target = $region92
    $region91: #{predictor_forward.1} parent=5 // pred_region
      %s1048 = ssub.s32 %s21, 2
      // Predicated region
      $region93: #{predictor_forward.1} parent=91 // pred_check
        %p1049 = pneg %p393
      $region94: #{predictor_forward.1} parent=91 // pred_check_branch
        %1051 = sbr.rel (%p1049) target = $region96
      $region95: #{predictor_forward.1} parent=91 // pred_region
        %p1052 = scmp.lt.s32.totalorder %s33, 1
        %s1053 = scalar_select %p1052, %s33, 1
        %p1054 = scmp.lt.s32.totalorder %s32, 0
        %s1055 = scalar_select %p1054, %s32, 0
        %s1056 = sadd.s32 %s1055, %s1053
        %s1057 = smul.addr %s1056, 8
        %s1058 = scalar_lea.vmem %s15, %s1057
      $region96: #{predictor_forward.1} parent=91 // pred_fallthru
        _
    $region92: #{predictor_forward.1} parent=5 // pred_fallthru
      _
  $region6: #{predictor_forward.1} parent=0 // loop_footer
    %s25 = sadd.s32 1, %s21
  $region7: #{predictor_forward.1} parent=0 // loop_footer_branch
    %20 = sbr.rel target = $region3
  $region8: #{predictor_forward.1} parent=0 // loop_exit
    _

</llo_original>
